<compile_context>
chip_gen: v7x
topology: tpu7x:2x2x1
jax: 0.10.0
libtpu: 0.0.40
codegen_flags: <defaults>
</compile_context>

<pallas_src>
import math
import functools

import jax
import jax.numpy as jnp
from jax import lax
from jax.experimental import pallas as pl
from jax.experimental.pallas import tpu as pltpu


def _encoder_attn_kernel(x_ref, wqkv_ref, bqkv_ref, o_ref, *,
                         num_heads, head_dim, hidden, matmul_dtype):
    """One grid step: Bt batch elements, fused QKV projection + per-head attention.

    x_ref    : (Bt, S, F)   input block (Bt batch elements)
    wqkv_ref : (F, 3H)      fused projection weight [Wq*scale | Wk | Wv] (grid-resident)
    bqkv_ref : (1, 3H)      fused bias [bq*scale | bk | bv] (f32, grid-resident)
    o_ref    : (Bt, S, H)   lane-dense output slab (head h occupies cols h*D:(h+1)*D)
    """
    Bt, S, F = x_ref.shape
    H = hidden

    # Fill the MXU M dimension with Bt*S rows; single MXU pass for all of Q, K, V.
    x = x_ref[...].reshape(Bt * S, F)
    if matmul_dtype is not None:
        x = x.astype(matmul_dtype)            # weights already cast by the wrapper
    qkv = jnp.dot(x, wqkv_ref[...], preferred_element_type=jnp.float32)   # (Bt*S, 3H) f32
    qkv = qkv + bqkv_ref[...]                 # f32 bias, broadcasts over rows
    qkv = qkv.reshape(Bt, S, 3 * H)           # sublane-only reshape (S % 8 == 0)

    head_outs = []
    for h in range(num_heads):                # static unroll (fine for nh=2; see TODO)
        q = qkv[:, :, h * head_dim:(h + 1) * head_dim]                       # (Bt,S,D)
        k = qkv[:, :, H + h * head_dim: H + (h + 1) * head_dim]              # (Bt,S,D)
        v = qkv[:, :, 2 * H + h * head_dim: 2 * H + (h + 1) * head_dim]      # (Bt,S,D)
        if matmul_dtype is not None:
            q = q.astype(matmul_dtype)
            k = k.astype(matmul_dtype)
            v = v.astype(matmul_dtype)

        # scores = q @ k^T, batched over the in-block batch dim; no k.T materialized.
        s = lax.dot_general(q, k,
                            dimension_numbers=(((2,), (2,)), ((0,), (0,))),
                            preferred_element_type=jnp.float32)              # (Bt,S,S)

        # Numerically stable softmax with deferred normalization (all f32).
        m = jnp.max(s, axis=-1, keepdims=True)                               # (Bt,S,1)
        p = jnp.exp(s - m)                                                   # (Bt,S,S)
        l = jnp.sum(p, axis=-1, keepdims=True)                               # (Bt,S,1)

        pv = lax.dot_general(p.astype(v.dtype), v,
                             dimension_numbers=(((2,), (1,)), ((0,), (0,))),
                             preferred_element_type=jnp.float32)             # (Bt,S,D)
        head_outs.append(pv * pl.reciprocal(l, approx=True))                 # EUP recip

    # Assemble the lane-dense (Bt, S, H) slab and store it with one unmasked write.
    out = jnp.concatenate(head_outs, axis=-1)
    o_ref[...] = out.astype(o_ref.dtype)


def _pick_block_batch(B, S, F, H, target_rows=256, vmem_budget_bytes=16 * 1024 * 1024):
    """Choose Bt (batch elements per grid step).

    Prefer the smallest divisor of B whose row count Bt*S fills the MXU M dimension
    (>=256 rows, the v6e/v7x MXU height) while staying inside a conservative VMEM
    budget (sized against v7x's 32 MiB default scoped VMEM). If even the whole batch
    cannot reach the target, prefer a grid of length 2 so v7x's two TensorCores both
    get a parallel step.
    """
    def block_f32_bytes(bt):
        rows = bt * S
        # double-buffered x/out blocks + resident qkv + two live (S,S) score tiles
        return 4 * rows * (2 * F + 3 * H + 2 * H + 2 * S)

    divisors = [d for d in range(1, B + 1) if B % d == 0]
    fitting = [d for d in divisors if block_f32_bytes(d) <= vmem_budget_bytes] or [1]
    for d in fitting:                          # ascending -> smallest MXU-filling block
        if d * S >= target_rows:
            return d
    bt = fitting[-1]
    if B // bt == 1 and B % 2 == 0 and (B // 2) in fitting:
        return B // 2                          # keep the parallel grid even (v7x, 2 TCs)
    return bt


@functools.partial(jax.jit, static_argnames=("num_heads", "block_batch", "matmul_dtype"))
def encoder_forward(x, wq, bq, wk, bk, wv, bv, *, num_heads,
                    block_batch=None, matmul_dtype=None):
    """x: (B, S, F); w*: (F, H) (already transposed so y = x @ W + b); b*: (H,).

    Returns (B, S, H), identical to `attention.transpose(1, 2).view(B, S, -1)` in the
    PyTorch reference. `matmul_dtype=jnp.bfloat16` routes MXU operands through bf16
    (v6e/v7x fast path) while keeping softmax math and accumulation in f32.
    """
    B, S, F = x.shape
    H = wq.shape[1]
    D = H // num_heads

    # Fold 1/sqrt(d_k) into the Q projection (exact) and fuse [Wq|Wk|Wv] -> (F, 3H).
    scale = 1.0 / math.sqrt(D)
    wqkv = jnp.concatenate([wq * scale, wk, wv], axis=1)                    # (F, 3H)
    bqkv = jnp.concatenate([bq * scale, bk, bv], axis=0).reshape(1, 3 * H)  # f32 bias
    if matmul_dtype is not None:
        wqkv = wqkv.astype(matmul_dtype)       # weight-sized cast, done once

    Bt = block_batch if block_batch is not None else _pick_block_batch(B, S, F, H)
    assert B % Bt == 0, (B, Bt)
    grid = (B // Bt,)

    kernel = functools.partial(_encoder_attn_kernel, num_heads=num_heads,
                               head_dim=D, hidden=H, matmul_dtype=matmul_dtype)

    out = pl.pallas_call(
        kernel,
        out_shape=jax.ShapeDtypeStruct((B, S, H), x.dtype),
        grid_spec=pltpu.PrefetchScalarGridSpec(
            num_scalar_prefetch=0,
            grid=grid,
            in_specs=[
                pl.BlockSpec((Bt, S, F), lambda b: (b, 0, 0)),   # per-step batch slab
                pl.BlockSpec((F, 3 * H), lambda b: (0, 0)),      # weights: grid-invariant
                pl.BlockSpec((1, 3 * H), lambda b: (0, 0)),      # bias: grid-invariant
            ],
            out_specs=pl.BlockSpec((Bt, S, H), lambda b: (b, 0, 0)),
        ),
        compiler_params=pltpu.CompilerParams(
            dimension_semantics=("parallel",)),
    )(x, wqkv, bqkv)

    return out


def _reference_forward(x, wq, bq, wk, bk, wv, bv, num_heads):
    """Pure-JAX replica of the PyTorch forward, for a correctness check."""
    B, S, F = x.shape
    H = wq.shape[1]
    D = H // num_heads
    q = (x @ wq + bq).reshape(B, S, num_heads, D).transpose(0, 2, 1, 3)
    k = (x @ wk + bk).reshape(B, S, num_heads, D).transpose(0, 2, 1, 3)
    v = (x @ wv + bv).reshape(B, S, num_heads, D).transpose(0, 2, 1, 3)
    scores = jnp.einsum("bhqd,bhkd->bhqk", q, k) / math.sqrt(D)
    p = jax.nn.softmax(scores, axis=-1)
    attn = jnp.einsum("bhqk,bhkd->bhqd", p, v)
    return attn.transpose(0, 2, 1, 3).reshape(B, S, H)


if __name__ == "__main__":
    # Module defaults: num_features=64, hidden_size=128, num_heads=2.
    num_features = 64
    hidden_size = 128
    num_heads = 2

    def run_case(batch, seq, matmul_dtype, tol):
        key = jax.random.PRNGKey(0)
        kx, kq, kk, kv, kbq, kbk, kbv = jax.random.split(key, 7)

        x = jax.random.normal(kx, (batch, seq, num_features), dtype=jnp.float32)

        # Deterministic "Linear" params (stored already-transposed: (F,H) so y = x@W + b).
        s = 1.0 / math.sqrt(num_features)
        wq = jax.random.uniform(kq, (num_features, hidden_size), jnp.float32, -s, s)
        wk = jax.random.uniform(kk, (num_features, hidden_size), jnp.float32, -s, s)
        wv = jax.random.uniform(kv, (num_features, hidden_size), jnp.float32, -s, s)
        bq = jax.random.uniform(kbq, (hidden_size,), jnp.float32, -s, s)
        bk = jax.random.uniform(kbk, (hidden_size,), jnp.float32, -s, s)
        bv = jax.random.uniform(kbv, (hidden_size,), jnp.float32, -s, s)

        out = encoder_forward(x, wq, bq, wk, bk, wv, bv,
                              num_heads=num_heads, matmul_dtype=matmul_dtype)
        out = jax.block_until_ready(out)

        ref = _reference_forward(x, wq, bq, wk, bk, wv, bv, num_heads)
        assert out.shape == (batch, seq, hidden_size), out.shape
        assert jnp.allclose(out, ref, atol=tol, rtol=tol), (
            f"mismatch vs reference (B={batch}, S={seq}, matmul_dtype={matmul_dtype})")

    # 1) Module-default shapes, all-f32 MXU operands (only approx-recip deviation).
    run_case(batch=2, seq=8, matmul_dtype=None, tol=2e-3)
    # 2) Larger case exercising Bt>1 row batching and the bf16 MXU fast path (v6e/v7x).
    run_case(batch=8, seq=64, matmul_dtype=jnp.bfloat16, tol=2e-2)

    print("KERNEL_OK")
</pallas_src>

<mosaic_0001>
module attributes {stable_mosaic.version = 11 : i64} {
  func.func @_encoder_attn_kernel(%arg0: i32, %arg1: memref<1x8x64xf32, #tpu.memory_space<vmem>>, %arg2: memref<64x384xf32, #tpu.memory_space<vmem>>, %arg3: memref<1x384xf32, #tpu.memory_space<vmem>>, %arg4: memref<1x8x128xf32, #tpu.memory_space<vmem>>) attributes {dimension_semantics = [#tpu.dimension_semantics<parallel>], iteration_bounds = array<i64: 2>, scalar_prefetch = 0 : i64, scratch_operands = 0 : i64, tpu.core_type = #tpu.core_type<tc>, window_params = [{transform_indices = @transform_0, window_bounds = array<i64: 1, 8, 64>}, {pipeline_mode = #tpu.pipeline_mode<synchronous>, transform_indices = @transform_1, window_bounds = array<i64: 64, 384>}, {pipeline_mode = #tpu.pipeline_mode<synchronous>, transform_indices = @transform_2, window_bounds = array<i64: 1, 384>}, {transform_indices = @transform_3, window_bounds = array<i64: 1, 8, 128>}]} {
    %c0 = arith.constant 0 : index
    %c0_0 = arith.constant 0 : index
    %c0_1 = arith.constant 0 : index
    %0 = vector.load %arg1[%c0, %c0_0, %c0_1] : memref<1x8x64xf32, #tpu.memory_space<vmem>>, vector<1x8x64xf32>
    %1 = vector.shape_cast %0 : vector<1x8x64xf32> to vector<8x64xf32>
    %c0_2 = arith.constant 0 : index
    %c0_3 = arith.constant 0 : index
    %2 = vector.load %arg2[%c0_2, %c0_3] : memref<64x384xf32, #tpu.memory_space<vmem>>, vector<64x384xf32>
    %cst = arith.constant dense<0.000000e+00> : vector<8x384xf32>
    %3 = tpu.matmul %1, %2, %cst {dimension_numbers = #tpu.dot_dimension_numbers<[1], [0], [0], [1], [0, 0, 1, 1], [], []>} : vector<8x64xf32>, vector<64x384xf32>, vector<8x384xf32> -> vector<8x384xf32>
    %c0_4 = arith.constant 0 : index
    %c0_5 = arith.constant 0 : index
    %4 = vector.load %arg3[%c0_4, %c0_5] : memref<1x384xf32, #tpu.memory_space<vmem>>, vector<1x384xf32>
    %5 = vector.broadcast %4 : vector<1x384xf32> to vector<8x384xf32>
    %6 = arith.addf %3, %5 : vector<8x384xf32>
    %7 = vector.shape_cast %6 : vector<8x384xf32> to vector<1x8x384xf32>
    %8 = vector.extract_strided_slice %7 {offsets = [0, 0, 0], sizes = [1, 8, 64], strides = [1, 1, 1]} : vector<1x8x384xf32> to vector<1x8x64xf32>
    %9 = vector.extract_strided_slice %7 {offsets = [0, 0, 128], sizes = [1, 8, 64], strides = [1, 1, 1]} : vector<1x8x384xf32> to vector<1x8x64xf32>
    %10 = vector.extract_strided_slice %7 {offsets = [0, 0, 256], sizes = [1, 8, 64], strides = [1, 1, 1]} : vector<1x8x384xf32> to vector<1x8x64xf32>
    %cst_6 = arith.constant dense<0.000000e+00> : vector<1x8x8xf32>
    %11 = tpu.matmul %8, %9, %cst_6 {dimension_numbers = #tpu.dot_dimension_numbers<[2], [2], [1], [1], [0, 0, 0, 1, 1, 1], [0], [0]>} : vector<1x8x64xf32>, vector<1x8x64xf32>, vector<1x8x8xf32> -> vector<1x8x8xf32>
    %cst_7 = arith.constant dense<0xFF800000> : vector<1x8xf32>
    %12 = vector.multi_reduction <maximumf>, %11, %cst_7 [2] : vector<1x8x8xf32> to vector<1x8xf32>
    %13 = vector.shape_cast %12 : vector<1x8xf32> to vector<1x8x1xf32>
    %14 = vector.broadcast %13 : vector<1x8x1xf32> to vector<1x8x8xf32>
    %15 = arith.subf %11, %14 : vector<1x8x8xf32>
    %16 = math.exp %15 : vector<1x8x8xf32>
    %cst_8 = arith.constant dense<0.000000e+00> : vector<1x8xf32>
    %17 = vector.multi_reduction <add>, %16, %cst_8 [2] : vector<1x8x8xf32> to vector<1x8xf32>
    %18 = vector.shape_cast %17 : vector<1x8xf32> to vector<1x8x1xf32>
    %cst_9 = arith.constant dense<0.000000e+00> : vector<1x8x64xf32>
    %19 = tpu.matmul %16, %10, %cst_9 {dimension_numbers = #tpu.dot_dimension_numbers<[2], [1], [1], [2], [0, 0, 0, 1, 1, 2], [0], [0]>} : vector<1x8x8xf32>, vector<1x8x64xf32>, vector<1x8x64xf32> -> vector<1x8x64xf32>
    %20 = tpu.reciprocal %18 {approx = true} : vector<1x8x1xf32> -> vector<1x8x1xf32>
    %21 = vector.broadcast %20 : vector<1x8x1xf32> to vector<1x8x64xf32>
    %22 = arith.mulf %19, %21 : vector<1x8x64xf32>
    %23 = vector.extract_strided_slice %7 {offsets = [0, 0, 64], sizes = [1, 8, 64], strides = [1, 1, 1]} : vector<1x8x384xf32> to vector<1x8x64xf32>
    %24 = vector.extract_strided_slice %7 {offsets = [0, 0, 192], sizes = [1, 8, 64], strides = [1, 1, 1]} : vector<1x8x384xf32> to vector<1x8x64xf32>
    %25 = vector.extract_strided_slice %7 {offsets = [0, 0, 320], sizes = [1, 8, 64], strides = [1, 1, 1]} : vector<1x8x384xf32> to vector<1x8x64xf32>
    %cst_10 = arith.constant dense<0.000000e+00> : vector<1x8x8xf32>
    %26 = tpu.matmul %23, %24, %cst_10 {dimension_numbers = #tpu.dot_dimension_numbers<[2], [2], [1], [1], [0, 0, 0, 1, 1, 1], [0], [0]>} : vector<1x8x64xf32>, vector<1x8x64xf32>, vector<1x8x8xf32> -> vector<1x8x8xf32>
    %cst_11 = arith.constant dense<0xFF800000> : vector<1x8xf32>
    %27 = vector.multi_reduction <maximumf>, %26, %cst_11 [2] : vector<1x8x8xf32> to vector<1x8xf32>
    %28 = vector.shape_cast %27 : vector<1x8xf32> to vector<1x8x1xf32>
    %29 = vector.broadcast %28 : vector<1x8x1xf32> to vector<1x8x8xf32>
    %30 = arith.subf %26, %29 : vector<1x8x8xf32>
    %31 = math.exp %30 : vector<1x8x8xf32>
    %cst_12 = arith.constant dense<0.000000e+00> : vector<1x8xf32>
    %32 = vector.multi_reduction <add>, %31, %cst_12 [2] : vector<1x8x8xf32> to vector<1x8xf32>
    %33 = vector.shape_cast %32 : vector<1x8xf32> to vector<1x8x1xf32>
    %cst_13 = arith.constant dense<0.000000e+00> : vector<1x8x64xf32>
    %34 = tpu.matmul %31, %25, %cst_13 {dimension_numbers = #tpu.dot_dimension_numbers<[2], [1], [1], [2], [0, 0, 0, 1, 1, 2], [0], [0]>} : vector<1x8x8xf32>, vector<1x8x64xf32>, vector<1x8x64xf32> -> vector<1x8x64xf32>
    %35 = tpu.reciprocal %33 {approx = true} : vector<1x8x1xf32> -> vector<1x8x1xf32>
    %36 = vector.broadcast %35 : vector<1x8x1xf32> to vector<1x8x64xf32>
    %37 = arith.mulf %34, %36 : vector<1x8x64xf32>
    %38 = tpu.concatenate %22, %37 in 2 : vector<1x8x64xf32>, vector<1x8x64xf32> -> vector<1x8x128xf32>
    %c0_14 = arith.constant 0 : index
    %c0_15 = arith.constant 0 : index
    %c0_16 = arith.constant 0 : index
    %39 = vector.load %arg4[%c0_14, %c0_15, %c0_16] : memref<1x8x128xf32, #tpu.memory_space<vmem>>, vector<1x8x128xf32>
    tpu.vector_store %arg4[%c0_14, %c0_15, %c0_16], %38 {strides = array<i32>} : memref<1x8x128xf32, #tpu.memory_space<vmem>>, vector<1x8x128xf32>,
    return
  }
  func.func @transform_0(%arg0: i32) -> (i32, i32, i32) {
    %c0_i32 = arith.constant 0 : i32
    %c0_i32_0 = arith.constant 0 : i32
    %c0_i32_1 = arith.constant 0 : i32
    return %arg0, %c0_i32, %c0_i32_0 : i32, i32, i32
  }
  func.func @transform_1(%arg0: i32) -> (i32, i32) {
    %c0_i32 = arith.constant 0 : i32
    %c0_i32_0 = arith.constant 0 : i32
    %c0_i32_1 = arith.constant 0 : i32
    return %c0_i32, %c0_i32_0 : i32, i32
  }
  func.func @transform_2(%arg0: i32) -> (i32, i32) {
    %c0_i32 = arith.constant 0 : i32
    %c0_i32_0 = arith.constant 0 : i32
    %c0_i32_1 = arith.constant 0 : i32
    return %c0_i32, %c0_i32_0 : i32, i32
  }
  func.func @transform_3(%arg0: i32) -> (i32, i32, i32) {
    %c0_i32 = arith.constant 0 : i32
    %c0_i32_0 = arith.constant 0 : i32
    %c0_i32_1 = arith.constant 0 : i32
    return %arg0, %c0_i32, %c0_i32_0 : i32, i32, i32
  }
}

</mosaic_0001>

<llo_original>
// kernel: encoder_forward.1
$region0: #{encoder_forward.1}
  #allocation0 [shape = 'u32[]', space=smem, size = 0x4, offset = 0x4, fixed_abs, tag = 'smem constant byte address 0x4 - core index']
  #allocation1 [shape = 'u32[144,128]{1,0:T(1,128)}', space=vmem, size = 0x12000, scoped, tag = 'internal scratch']
  %s0 = inlined_call_operand.vmem [shape: f32[2,8,64], index: 0, kind: input, shape index: {}]
  %s1 = inlined_call_operand.vmem [shape: f32[64,384], index: 1, kind: input, shape index: {}]
  %s2 = inlined_call_operand.vmem [shape: f32[1,384], index: 2, kind: input, shape index: {}]
  %s3 = inlined_call_operand.hbm [shape: f32[2,8,128], index: 3, kind: output, shape index: {}]
  %s4 = sld [smem:[#allocation0]]
  $region45: #{encoder_forward.1} parent=0
    _
  %s6 = ssub.s32 1, %s4
  %s7 = scalar_select 0, %s6, %s4
  $region1: #{encoder_forward.1} parent=0
    #allocation2 [shape = 'u8[8192]{0}', space=vmem, size = 0x2000, scoped, tag = 'output window, operand 0']
    #allocation3 [shape = 's32[2]{0}', space=sflag, size = 0x8, scoped, tag = 'scoped memory for encoder_forward.1']
    %8 = vsyncpa [#allocation3], 0
    %s9 = scalar_lea.sflag [#allocation3], 1
    %10 = vsyncpa %s9, 0
    loop: start=0, step=1, limit=4
    $region2: #{encoder_forward.1} parent=1 // loop_pre_header
      _
    $region3: #{encoder_forward.1} parent=1 // loop_header
      %s12 = sphi 0, %s16
      %p13 = scmp.ge.s32.totalorder %s12, 4
      %s22 = sphi 0, %s24
      %s25 = sphi 0, %s22
      %s26 = sphi 0, %s25
      %s42 = sphi 0, %s26
      %s46 = sphi 0, %s46
      %s48 = sphi 0, %s46
      %s49 = sphi 0, %s48
      %s63 = sphi 0, %s49
      %s67 = sphi 0, %s67
      %s69 = sphi 0, %s67
      %s70 = sphi 0, %s69
      %s84 = sphi 0, %s70
      %s90 = sphi 0, %s92
      %s93 = sphi 0, %s90
      %s94 = sphi 0, %s93
      %s110 = sphi 0, %s94
    $region4: #{encoder_forward.1} parent=1 // loop_header_branch
      %15 = sbr.rel (%p13) target = $region8
    $region5: #{encoder_forward.1} parent=1 // loop_body
      %s17 = ssub.s32 %s12, 1
      %s18 = ssub.s32 %s12, 2
      %s19 = sadd.s32 %s12, 1
      %s20 = ssub.s32 %s12, %s19
      %p21 = scmp.eq.s32.totalorder %s20, 0
      %s23 = sadd.s32 %s22, 1
      %s24 = scalar_select %p21, %s22, %s23
      %p27 = pneg %p21
      %p28 = scmp.eq.s32.totalorder %s12, 1
      %p29 = por %p27, %p28
      %p30 = scmp.ne.s32.totalorder %s22, %s25
      %p31 = scmp.eq.s32.totalorder %s12, 0
      %p32 = por %p30, %p31
      %p33 = scmp.ne.s32.totalorder %s22, %s25
      %p34 = scmp.eq.s32.totalorder %s17, 1
      %p35 = por %p33, %p34
      %p36 = scmp.ne.s32.totalorder %s25, %s26
      %p37 = scmp.eq.s32.totalorder %s17, 0
      %p38 = por %p36, %p37
      %p39 = scmp.ne.s32.totalorder %s25, %s26
      %p40 = scmp.eq.s32.totalorder %s18, 1
      %p41 = por %p39, %p40
      %p43 = scmp.ne.s32.totalorder %s26, %s42
      %p44 = scmp.eq.s32.totalorder %s18, 0
      %p45 = por %p43, %p44
      %s47 = sadd.s32 %s46, 1
      %p50 = scmp.eq.s32.totalorder %s12, 1
      %p51 = scmp.ne.s32.totalorder %s46, %s48
      %p52 = scmp.eq.s32.totalorder %s12, 0
      %p53 = por %p51, %p52
      %p54 = scmp.ne.s32.totalorder %s46, %s48
      %p55 = scmp.eq.s32.totalorder %s17, 1
      %p56 = por %p54, %p55
      %p57 = scmp.ne.s32.totalorder %s48, %s49
      %p58 = scmp.eq.s32.totalorder %s17, 0
      %p59 = por %p57, %p58
      %p60 = scmp.ne.s32.totalorder %s48, %s49
      %p61 = scmp.eq.s32.totalorder %s18, 1
      %p62 = por %p60, %p61
      %p64 = scmp.ne.s32.totalorder %s49, %s63
      %p65 = scmp.eq.s32.totalorder %s18, 0
      %p66 = por %p64, %p65
      %s68 = sadd.s32 %s67, 1
      %p71 = scmp.eq.s32.totalorder %s12, 1
      %p72 = scmp.ne.s32.totalorder %s67, %s69
      %p73 = scmp.eq.s32.totalorder %s12, 0
      %p74 = por %p72, %p73
      %p75 = scmp.ne.s32.totalorder %s67, %s69
      %p76 = scmp.eq.s32.totalorder %s17, 1
      %p77 = por %p75, %p76
      %p78 = scmp.ne.s32.totalorder %s69, %s70
      %p79 = scmp.eq.s32.totalorder %s17, 0
      %p80 = por %p78, %p79
      %p81 = scmp.ne.s32.totalorder %s69, %s70
      %p82 = scmp.eq.s32.totalorder %s18, 1
      %p83 = por %p81, %p82
      %p85 = scmp.ne.s32.totalorder %s70, %s84
      %p86 = scmp.eq.s32.totalorder %s18, 0
      %p87 = por %p85, %p86
      %s88 = ssub.s32 %s12, %s19
      %p89 = scmp.eq.s32.totalorder %s88, 0
      %s91 = sadd.s32 %s90, 1
      %s92 = scalar_select %p89, %s90, %s91
      %p95 = pneg %p89
      %p96 = scmp.eq.s32.totalorder %s12, 1
      %p97 = por %p95, %p96
      %p98 = scmp.ne.s32.totalorder %s90, %s93
      %p99 = scmp.eq.s32.totalorder %s12, 0
      %p100 = por %p98, %p99
      %p101 = scmp.ne.s32.totalorder %s90, %s93
      %p102 = scmp.eq.s32.totalorder %s17, 1
      %p103 = por %p101, %p102
      %p104 = scmp.ne.s32.totalorder %s93, %s94
      %p105 = scmp.eq.s32.totalorder %s17, 0
      %p106 = por %p104, %p105
      %p107 = scmp.ne.s32.totalorder %s93, %s94
      %p108 = scmp.eq.s32.totalorder %s18, 1
      %p109 = por %p107, %p108
      %p111 = scmp.ne.s32.totalorder %s94, %s110
      %p112 = scmp.eq.s32.totalorder %s18, 0
      %p113 = por %p111, %p112
      %p114 = scmp.le.s32.totalorder 1, %s12
      %p115 = scmp.lt.s32.totalorder %s12, 3
      %p116 = pnand %p114, %p115
      %p117 = pneg %p116
      // Predicated region
      $region9: #{encoder_forward.1} parent=5 // pred_check
        _
      $region10: #{encoder_forward.1} parent=5 // pred_check_branch
        %119 = sbr.rel (%p116) target = $region12
      $region11: #{encoder_forward.1} parent=5 // pred_region
        %s120 = ssub.s32 %s12, 1
        // Predicated region
        $region13: #{encoder_forward.1} parent=11 // pred_check
          %p121 = pneg %p59
        $region14: #{encoder_forward.1} parent=11 // pred_check_branch
          %123 = sbr.rel (%p121) target = $region16
        $region15: #{encoder_forward.1} parent=11 // pred_region
          _
        $region16: #{encoder_forward.1} parent=11 // pred_fallthru
          _
        // Predicated region
        $region17: #{encoder_forward.1} parent=11 // pred_check
          %p124 = pneg %p80
        $region18: #{encoder_forward.1} parent=11 // pred_check_branch
          %126 = sbr.rel (%p124) target = $region20
        $region19: #{encoder_forward.1} parent=11 // pred_region
          _
        $region20: #{encoder_forward.1} parent=11 // pred_fallthru
          _
      $region12: #{encoder_forward.1} parent=5 // pred_fallthru
        _
      %p127 = scmp.lt.s32.totalorder %s12, 2
      // Predicated region
      $region21: #{encoder_forward.1} parent=5 // pred_check
        %p128 = pneg %p127
      $region22: #{encoder_forward.1} parent=5 // pred_check_branch
        %130 = sbr.rel (%p128) target = $region24
      $region23: #{encoder_forward.1} parent=5 // pred_region
        // Predicated region
        $region25: #{encoder_forward.1} parent=23 // pred_check
          %p131 = pneg %p32
        $region26: #{encoder_forward.1} parent=23 // pred_check_branch
          %133 = sbr.rel (%p131) target = $region28
        $region27: #{encoder_forward.1} parent=23 // pred_region
          %p134 = scmp.lt.s32.totalorder %s12, 1
          %s135 = scalar_select %p134, %s12, 1
          %s136 = smul.addr %s135, 8
          %s137 = scalar_lea.vmem %s0, %s136
        $region28: #{encoder_forward.1} parent=23 // pred_fallthru
          _
      $region24: #{encoder_forward.1} parent=5 // pred_fallthru
        _
      %p138 = scmp.le.s32.totalorder 1, %s12
      %p139 = scmp.lt.s32.totalorder %s12, 3
      %p140 = pnand %p138, %p139
      %p141 = pneg %p140
      // Predicated region
      $region29: #{encoder_forward.1} parent=5 // pred_check
        _
      $region30: #{encoder_forward.1} parent=5 // pred_check_branch
        %143 = sbr.rel (%p140) target = $region32
      $region31: #{encoder_forward.1} parent=5 // pred_region
        %s144 = ssub.s32 %s12, 1
        %p145 = scmp.lt.s32.totalorder %s17, 1
        %s146 = scalar_select %p145, %s17, 1
        %s147 = smul.addr %s146, 8
        %s148 = scalar_lea.vmem %s0, %s147
        %p149 = pneg %p38
        %p150 = pneg %p35
        %p151 = pneg %p59
        %p152 = pneg %p56
        %p153 = pneg %p80
        %p154 = pneg %p77
        %p155 = pneg %p106
        %p156 = pneg %p103
        %s157 = sand.u32 %s93, 1
        %s158 = scalar_lea.sflag [#allocation3], %s157
        %s159 = sand.u32 %s93, 1
        %s160 = smul.addr %s159, 8
        %s161 = scalar_lea.vmem [#allocation2], %s160
        %p162 = scmp.lt.s32.totalorder %s17, 1
        %s163 = scalar_select %p162, %s17, 1
        %s164 = smul.addr %s163, 8
        %s165 = scalar_lea.vmem %s0, %s164
        %v166 = vld [vmem:[%s165] sm:$0xff]
        %v167 = vld [vmem:[%s1] sm:$0xff]
        %v168 = vld [vmem:[%s1 + $0x8] sm:$0xff]
        %v169 = vld [vmem:[%s1 + $0x10] sm:$0xff]
        %v170 = vld [vmem:[%s1 + $0x18] sm:$0xff]
        %v171 = vld [vmem:[%s1 + $0x20] sm:$0xff]
        %v172 = vld [vmem:[%s1 + $0x28] sm:$0xff]
        %v173 = vld [vmem:[%s1 + $0x30] sm:$0xff]
        %v174 = vld [vmem:[%s1 + $0x38] sm:$0xff]
        %v175 = vld [vmem:[%s1 + $0x40] sm:$0xff]
        %v176 = vld [vmem:[%s1 + $0x48] sm:$0xff]
        %v177 = vld [vmem:[%s1 + $0x50] sm:$0xff]
        %v178 = vld [vmem:[%s1 + $0x58] sm:$0xff]
        %v179 = vld [vmem:[%s1 + $0x60] sm:$0xff]
        %v180 = vld [vmem:[%s1 + $0x68] sm:$0xff]
        %v181 = vld [vmem:[%s1 + $0x70] sm:$0xff]
        %v182 = vld [vmem:[%s1 + $0x78] sm:$0xff]
        %v183 = vld [vmem:[%s1 + $0x80] sm:$0xff]
        %v184 = vld [vmem:[%s1 + $0x88] sm:$0xff]
        %v185 = vld [vmem:[%s1 + $0x90] sm:$0xff]
        %v186 = vld [vmem:[%s1 + $0x98] sm:$0xff]
        %v187 = vld [vmem:[%s1 + $0xa0] sm:$0xff]
        %v188 = vld [vmem:[%s1 + $0xa8] sm:$0xff]
        %v189 = vld [vmem:[%s1 + $0xb0] sm:$0xff]
        %v190 = vld [vmem:[%s1 + $0xb8] sm:$0xff]
        %v191 = vld [vmem:[%s2] sm:$0x7]
        %v193 = vlaneseq
        %v194 = vshrl.u32 %v193, 7
        %v195 = vsub.s32 0, %v194
        %v196 = vrot.slane %v191, %v195
        %v197 = vlaneseq
        %v198 = vshrl.u32 %v197, 7
        %v199 = vsub.s32 1, %v198
        %v200 = vrot.slane %v191, %v199
        %v201 = vlaneseq
        %v202 = vshrl.u32 %v201, 7
        %v203 = vsub.s32 2, %v202
        %v204 = vrot.slane %v191, %v203
        %vm208 = vcmask 523264
        %v210 = vsel %vm208, %v166, 0
        %212 = vmatprep.subr.mxu0 %v168
        %213 = vmatpush1.msra.mxu0 %v167
        %214 = vmatprep.subr.mxu0 %v171
        %215 = vmatpush1.msra.mxu0 %v170
        %216 = vmatprep.subr.mxu0 %v174
        %217 = vmatpush1.msra.mxu0 %v173
        %218 = vmatprep.subr.mxu0 %v177
        %219 = vmatpush1.msra.mxu0 %v176
        %220 = vmatprep.subr.mxu0 %v180
        %221 = vmatpush1.msra.mxu0 %v179
        %222 = vmatprep.subr.mxu0 %v183
        %223 = vmatpush1.msra.mxu0 %v182
        %224 = vmatprep.subr.mxu0 %v186
        %225 = vmatpush1.msra.mxu0 %v185
        %226 = vmatprep.subr.mxu0 %v189
        %227 = vmatpush1.msra.mxu0 %v188
        %228 = vmatprep.subr.mxu0 0.0
        %229 = vmatpush1.msra.mxu0 0.0
        %230 = vmatprep.subr.mxu0 0.0
        %231 = vmatpush1.msra.mxu0 0.0
        %232 = vmatprep.subr.mxu0 0.0
        %233 = vmatpush1.msra.mxu0 0.0
        %234 = vmatprep.subr.mxu0 0.0
        %235 = vmatpush1.msra.mxu0 0.0
        %236 = vmatprep.subr.mxu0 0.0
        %237 = vmatpush1.msra.mxu0 0.0
        %238 = vmatprep.subr.mxu0 0.0
        %239 = vmatpush1.msra.mxu0 0.0
        %240 = vmatprep.subr.mxu0 0.0
        %241 = vmatpush1.msra.mxu0 0.0
        %242 = vmatprep.subr.mxu0 0.0
        %243 = vmatpush1.msra.mxu0 0.0
        %244 = vmatprep.subr.mxu0 0.0
        %245 = vmatpush1.msra.mxu0 0.0
        %246 = vmatprep.subr.mxu0 0.0
        %247 = vmatpush1.msra.mxu0 0.0
        %248 = vmatprep.subr.mxu0 0.0
        %249 = vmatpush1.msra.mxu0 0.0
        %250 = vmatprep.subr.mxu0 0.0
        %251 = vmatpush1.msra.mxu0 0.0
        %252 = vmatprep.subr.mxu0 0.0
        %253 = vmatpush1.msra.mxu0 0.0
        %254 = vmatprep.subr.mxu0 0.0
        %255 = vmatpush1.msra.mxu0 0.0
        %256 = vmatprep.subr.mxu0 0.0
        %257 = vmatpush1.msra.mxu0 0.0
        %258 = vmatprep.subr.mxu0 0.0
        %259 = vmatpush1.msra.mxu0 0.0
        %260 = vmatprep.subr.mxu0 0.0
        %261 = vmatpush1.msra.mxu0 0.0
        %262 = vmatprep.subr.mxu0 0.0
        %263 = vmatpush1.msra.mxu0 0.0
        %264 = vmatprep.subr.mxu0 0.0
        %265 = vmatpush1.msra.mxu0 0.0
        %266 = vmatprep.subr.mxu0 0.0
        %267 = vmatpush1.msra.mxu0 0.0
        %268 = vmatprep.subr.mxu0 0.0
        %269 = vmatpush1.msra.mxu0 0.0
        %270 = vmatprep.subr.mxu0 0.0
        %271 = vmatpush1.msra.mxu0 0.0
        %272 = vmatprep.subr.mxu0 0.0
        %273 = vmatpush1.msra.mxu0 0.0
        %274 = vmatprep.subr.mxu0 0.0
        %275 = vmatpush1.msra.mxu0 0.0
        %276 = vmatprep.mubr.f32.mxu0 0.0
        %277 = vmatmul.mubr.f32.gmra.mrb[0].mxu0 %v210
        %v278 = vpop.f32.mrb[0].mxu0
        %v279 = vadd.f32 %v196, %v278
        %v280 = vpop.f32.mrb[0].mxu0
        %v281 = vadd.f32 %v200, %v280
        %282 = vdwg.mxu0
        %283 = vmatprep.subr.mxu0 0.0
        %284 = vmatpush1.msra.mxu0 %v169
        %285 = vmatprep.subr.mxu0 0.0
        %286 = vmatpush1.msra.mxu0 %v172
        %287 = vmatprep.subr.mxu0 0.0
        %288 = vmatpush1.msra.mxu0 %v175
        %289 = vmatprep.subr.mxu0 0.0
        %290 = vmatpush1.msra.mxu0 %v178
        %291 = vmatprep.subr.mxu0 0.0
        %292 = vmatpush1.msra.mxu0 %v181
        %293 = vmatprep.subr.mxu0 0.0
        %294 = vmatpush1.msra.mxu0 %v184
        %295 = vmatprep.subr.mxu0 0.0
        %296 = vmatpush1.msra.mxu0 %v187
        %297 = vmatprep.subr.mxu0 0.0
        %298 = vmatpush1.msra.mxu0 %v190
        %299 = vmatprep.subr.mxu0 0.0
        %300 = vmatpush1.msra.mxu0 0.0
        %301 = vmatprep.subr.mxu0 0.0
        %302 = vmatpush1.msra.mxu0 0.0
        %303 = vmatprep.subr.mxu0 0.0
        %304 = vmatpush1.msra.mxu0 0.0
        %305 = vmatprep.subr.mxu0 0.0
        %306 = vmatpush1.msra.mxu0 0.0
        %307 = vmatprep.subr.mxu0 0.0
        %308 = vmatpush1.msra.mxu0 0.0
        %309 = vmatprep.subr.mxu0 0.0
        %310 = vmatpush1.msra.mxu0 0.0
        %311 = vmatprep.subr.mxu0 0.0
        %312 = vmatpush1.msra.mxu0 0.0
        %313 = vmatprep.subr.mxu0 0.0
        %314 = vmatpush1.msra.mxu0 0.0
        %315 = vmatprep.subr.mxu0 0.0
        %316 = vmatpush1.msra.mxu0 0.0
        %317 = vmatprep.subr.mxu0 0.0
        %318 = vmatpush1.msra.mxu0 0.0
        %319 = vmatprep.subr.mxu0 0.0
        %320 = vmatpush1.msra.mxu0 0.0
        %321 = vmatprep.subr.mxu0 0.0
        %322 = vmatpush1.msra.mxu0 0.0
        %323 = vmatprep.subr.mxu0 0.0
        %324 = vmatpush1.msra.mxu0 0.0
        %325 = vmatprep.subr.mxu0 0.0
        %326 = vmatpush1.msra.mxu0 0.0
        %327 = vmatprep.subr.mxu0 0.0
        %328 = vmatpush1.msra.mxu0 0.0
        %329 = vmatprep.subr.mxu0 0.0
        %330 = vmatpush1.msra.mxu0 0.0
        %331 = vmatprep.subr.mxu0 0.0
        %332 = vmatpush1.msra.mxu0 0.0
        %333 = vmatprep.subr.mxu0 0.0
        %334 = vmatpush1.msra.mxu0 0.0
        %335 = vmatprep.subr.mxu0 0.0
        %336 = vmatpush1.msra.mxu0 0.0
        %337 = vmatprep.subr.mxu0 0.0
        %338 = vmatpush1.msra.mxu0 0.0
        %339 = vmatprep.subr.mxu0 0.0
        %340 = vmatpush1.msra.mxu0 0.0
        %341 = vmatprep.subr.mxu0 0.0
        %342 = vmatpush1.msra.mxu0 0.0
        %343 = vmatprep.subr.mxu0 0.0
        %344 = vmatpush1.msra.mxu0 0.0
        %345 = vmatprep.subr.mxu0 0.0
        %346 = vmatpush1.msra.mxu0 0.0
        %347 = vmatprep.mubr.f32.mxu0 0.0
        %348 = vmatmul.mubr.f32.gmra.mrb[0].mxu0 %v210
        %v349 = vpop.f32.mrb[0].mxu0
        %v350 = vadd.f32 %v204, %v349
        %v351 = vpop.f32.mrb[0].mxu0
        %352 = vdwg.mxu0
        %v354 = vsel %vm208, %v279, 0
        %v357 = vsel %vm208, %v281, 0
        %359 = vmatprep.subr.mxu0 0.0
        %360 = vmatpush1.xpose.msra.mxu0 %v357
        %361 = vmatprep.subr.mxu0 0.0
        %362 = vmatpush1.xpose.msra.mxu0 0.0
        %363 = vmatprep.subr.mxu0 0.0
        %364 = vmatpush1.xpose.msra.mxu0 0.0
        %365 = vmatprep.subr.mxu0 0.0
        %366 = vmatpush1.xpose.msra.mxu0 0.0
        %367 = vmatprep.subr.mxu0 0.0
        %368 = vmatpush1.xpose.msra.mxu0 0.0
        %369 = vmatprep.subr.mxu0 0.0
        %370 = vmatpush1.xpose.msra.mxu0 0.0
        %371 = vmatprep.subr.mxu0 0.0
        %372 = vmatpush1.xpose.msra.mxu0 0.0
        %373 = vmatprep.subr.mxu0 0.0
        %374 = vmatpush1.xpose.msra.mxu0 0.0
        %375 = vmatprep.subr.mxu0 0.0
        %376 = vmatpush1.xpose.msra.mxu0 0.0
        %377 = vmatprep.subr.mxu0 0.0
        %378 = vmatpush1.xpose.msra.mxu0 0.0
        %379 = vmatprep.subr.mxu0 0.0
        %380 = vmatpush1.xpose.msra.mxu0 0.0
        %381 = vmatprep.subr.mxu0 0.0
        %382 = vmatpush1.xpose.msra.mxu0 0.0
        %383 = vmatprep.subr.mxu0 0.0
        %384 = vmatpush1.xpose.msra.mxu0 0.0
        %385 = vmatprep.subr.mxu0 0.0
        %386 = vmatpush1.xpose.msra.mxu0 0.0
        %387 = vmatprep.subr.mxu0 0.0
        %388 = vmatpush1.xpose.msra.mxu0 0.0
        %389 = vmatprep.subr.mxu0 0.0
        %390 = vmatpush1.xpose.msra.mxu0 0.0
        %391 = vmatprep.subr.mxu0 0.0
        %392 = vmatpush1.xpose.msra.mxu0 0.0
        %393 = vmatprep.subr.mxu0 0.0
        %394 = vmatpush1.xpose.msra.mxu0 0.0
        %395 = vmatprep.subr.mxu0 0.0
        %396 = vmatpush1.xpose.msra.mxu0 0.0
        %397 = vmatprep.subr.mxu0 0.0
        %398 = vmatpush1.xpose.msra.mxu0 0.0
        %399 = vmatprep.subr.mxu0 0.0
        %400 = vmatpush1.xpose.msra.mxu0 0.0
        %401 = vmatprep.subr.mxu0 0.0
        %402 = vmatpush1.xpose.msra.mxu0 0.0
        %403 = vmatprep.subr.mxu0 0.0
        %404 = vmatpush1.xpose.msra.mxu0 0.0
        %405 = vmatprep.subr.mxu0 0.0
        %406 = vmatpush1.xpose.msra.mxu0 0.0
        %407 = vmatprep.subr.mxu0 0.0
        %408 = vmatpush1.xpose.msra.mxu0 0.0
        %409 = vmatprep.subr.mxu0 0.0
        %410 = vmatpush1.xpose.msra.mxu0 0.0
        %411 = vmatprep.subr.mxu0 0.0
        %412 = vmatpush1.xpose.msra.mxu0 0.0
        %413 = vmatprep.subr.mxu0 0.0
        %414 = vmatpush1.xpose.msra.mxu0 0.0
        %415 = vmatprep.subr.mxu0 0.0
        %416 = vmatpush1.xpose.msra.mxu0 0.0
        %417 = vmatprep.subr.mxu0 0.0
        %418 = vmatpush1.xpose.msra.mxu0 0.0
        %419 = vmatprep.subr.mxu0 0.0
        %420 = vmatpush1.xpose.msra.mxu0 0.0
        %421 = vmatprep.subr.mxu0 0.0
        %422 = vmatpush1.xpose.msra.mxu0 0.0
        %423 = vmatprep.mubr.f32.mxu0 0.0
        %424 = vmatmul.mubr.f32.gmra.mrb[0].mxu0 %v354
        %v425 = vpop.f32.mrb[0].mxu0
        %v426 = vadd.f32 0.0, %v425
        %v427 = vpop.f32.mrb[0].mxu0
        %428 = vdwg.mxu0
        %vm429 = vcmask 64512
        %v430 = vsel %vm429, %v426, -inf
        %431 = vmax.xlane.f32.xlu0 %v430
        %v432 = vpop.xlane.xlu0 %431
        %v433 = vsub.f32 %v426, %v432
        %v434 = vmul.f32 %v433, 1.442695
        %v435 = vpow.pop %v434
        %v436 = vsel %vm429, %v435, 0.0
        %437 = vadd.xlane.f32.xlu0 %v436
        %v438 = vpop.xlane.xlu0 %437
        %v440 = vsel %vm429, %v435, 0
        %442 = vmatprep.subr.mxu0 0.0
        %443 = vmatpush1.msra.mxu0 %v350
        %444 = vmatprep.subr.mxu0 0.0
        %445 = vmatpush1.msra.mxu0 0.0
        %446 = vmatprep.subr.mxu0 0.0
        %447 = vmatpush1.msra.mxu0 0.0
        %448 = vmatprep.subr.mxu0 0.0
        %449 = vmatpush1.msra.mxu0 0.0
        %450 = vmatprep.subr.mxu0 0.0
        %451 = vmatpush1.msra.mxu0 0.0
        %452 = vmatprep.subr.mxu0 0.0
        %453 = vmatpush1.msra.mxu0 0.0
        %454 = vmatprep.subr.mxu0 0.0
        %455 = vmatpush1.msra.mxu0 0.0
        %456 = vmatprep.subr.mxu0 0.0
        %457 = vmatpush1.msra.mxu0 0.0
        %458 = vmatprep.subr.mxu0 0.0
        %459 = vmatpush1.msra.mxu0 0.0
        %460 = vmatprep.subr.mxu0 0.0
        %461 = vmatpush1.msra.mxu0 0.0
        %462 = vmatprep.subr.mxu0 0.0
        %463 = vmatpush1.msra.mxu0 0.0
        %464 = vmatprep.subr.mxu0 0.0
        %465 = vmatpush1.msra.mxu0 0.0
        %466 = vmatprep.subr.mxu0 0.0
        %467 = vmatpush1.msra.mxu0 0.0
        %468 = vmatprep.subr.mxu0 0.0
        %469 = vmatpush1.msra.mxu0 0.0
        %470 = vmatprep.subr.mxu0 0.0
        %471 = vmatpush1.msra.mxu0 0.0
        %472 = vmatprep.subr.mxu0 0.0
        %473 = vmatpush1.msra.mxu0 0.0
        %474 = vmatprep.subr.mxu0 0.0
        %475 = vmatpush1.msra.mxu0 0.0
        %476 = vmatprep.subr.mxu0 0.0
        %477 = vmatpush1.msra.mxu0 0.0
        %478 = vmatprep.subr.mxu0 0.0
        %479 = vmatpush1.msra.mxu0 0.0
        %480 = vmatprep.subr.mxu0 0.0
        %481 = vmatpush1.msra.mxu0 0.0
        %482 = vmatprep.subr.mxu0 0.0
        %483 = vmatpush1.msra.mxu0 0.0
        %484 = vmatprep.subr.mxu0 0.0
        %485 = vmatpush1.msra.mxu0 0.0
        %486 = vmatprep.subr.mxu0 0.0
        %487 = vmatpush1.msra.mxu0 0.0
        %488 = vmatprep.subr.mxu0 0.0
        %489 = vmatpush1.msra.mxu0 0.0
        %490 = vmatprep.subr.mxu0 0.0
        %491 = vmatpush1.msra.mxu0 0.0
        %492 = vmatprep.subr.mxu0 0.0
        %493 = vmatpush1.msra.mxu0 0.0
        %494 = vmatprep.subr.mxu0 0.0
        %495 = vmatpush1.msra.mxu0 0.0
        %496 = vmatprep.subr.mxu0 0.0
        %497 = vmatpush1.msra.mxu0 0.0
        %498 = vmatprep.subr.mxu0 0.0
        %499 = vmatpush1.msra.mxu0 0.0
        %500 = vmatprep.subr.mxu0 0.0
        %501 = vmatpush1.msra.mxu0 0.0
        %502 = vmatprep.subr.mxu0 0.0
        %503 = vmatpush1.msra.mxu0 0.0
        %504 = vmatprep.subr.mxu0 0.0
        %505 = vmatpush1.msra.mxu0 0.0
        %506 = vmatprep.mubr.f32.mxu0 0.0
        %507 = vmatmul.mubr.f32.gmra.mrb[0].mxu0 %v440
        %v508 = vpop.f32.mrb[0].mxu0
        %v509 = vadd.f32 0.0, %v508
        %v510 = vpop.f32.mrb[0].mxu0
        %511 = vdwg.mxu0
        %v512 = vrcp.pop %v438
        %v513 = vmul.f32 %v509, %v512
        %514 = vrot.lane.b32.xlu0 %v279, 64
        %v515 = vpop.permute.xlu0 %514
        %516 = vrot.lane.b32.xlu0 %v281, 64
        %v517 = vpop.permute.xlu0 %516
        %v518 = vsel %vm208, %v515, 0
        %v520 = vsel %vm208, %v517, 0
        %522 = vmatprep.subr.mxu0 0.0
        %523 = vmatpush1.xpose.msra.mxu0 %v520
        %524 = vmatprep.subr.mxu0 0.0
        %525 = vmatpush1.xpose.msra.mxu0 0.0
        %526 = vmatprep.subr.mxu0 0.0
        %527 = vmatpush1.xpose.msra.mxu0 0.0
        %528 = vmatprep.subr.mxu0 0.0
        %529 = vmatpush1.xpose.msra.mxu0 0.0
        %530 = vmatprep.subr.mxu0 0.0
        %531 = vmatpush1.xpose.msra.mxu0 0.0
        %532 = vmatprep.subr.mxu0 0.0
        %533 = vmatpush1.xpose.msra.mxu0 0.0
        %534 = vmatprep.subr.mxu0 0.0
        %535 = vmatpush1.xpose.msra.mxu0 0.0
        %536 = vmatprep.subr.mxu0 0.0
        %537 = vmatpush1.xpose.msra.mxu0 0.0
        %538 = vmatprep.subr.mxu0 0.0
        %539 = vmatpush1.xpose.msra.mxu0 0.0
        %540 = vmatprep.subr.mxu0 0.0
        %541 = vmatpush1.xpose.msra.mxu0 0.0
        %542 = vmatprep.subr.mxu0 0.0
        %543 = vmatpush1.xpose.msra.mxu0 0.0
        %544 = vmatprep.subr.mxu0 0.0
        %545 = vmatpush1.xpose.msra.mxu0 0.0
        %546 = vmatprep.subr.mxu0 0.0
        %547 = vmatpush1.xpose.msra.mxu0 0.0
        %548 = vmatprep.subr.mxu0 0.0
        %549 = vmatpush1.xpose.msra.mxu0 0.0
        %550 = vmatprep.subr.mxu0 0.0
        %551 = vmatpush1.xpose.msra.mxu0 0.0
        %552 = vmatprep.subr.mxu0 0.0
        %553 = vmatpush1.xpose.msra.mxu0 0.0
        %554 = vmatprep.subr.mxu0 0.0
        %555 = vmatpush1.xpose.msra.mxu0 0.0
        %556 = vmatprep.subr.mxu0 0.0
        %557 = vmatpush1.xpose.msra.mxu0 0.0
        %558 = vmatprep.subr.mxu0 0.0
        %559 = vmatpush1.xpose.msra.mxu0 0.0
        %560 = vmatprep.subr.mxu0 0.0
        %561 = vmatpush1.xpose.msra.mxu0 0.0
        %562 = vmatprep.subr.mxu0 0.0
        %563 = vmatpush1.xpose.msra.mxu0 0.0
        %564 = vmatprep.subr.mxu0 0.0
        %565 = vmatpush1.xpose.msra.mxu0 0.0
        %566 = vmatprep.subr.mxu0 0.0
        %567 = vmatpush1.xpose.msra.mxu0 0.0
        %568 = vmatprep.subr.mxu0 0.0
        %569 = vmatpush1.xpose.msra.mxu0 0.0
        %570 = vmatprep.subr.mxu0 0.0
        %571 = vmatpush1.xpose.msra.mxu0 0.0
        %572 = vmatprep.subr.mxu0 0.0
        %573 = vmatpush1.xpose.msra.mxu0 0.0
        %574 = vmatprep.subr.mxu0 0.0
        %575 = vmatpush1.xpose.msra.mxu0 0.0
        %576 = vmatprep.subr.mxu0 0.0
        %577 = vmatpush1.xpose.msra.mxu0 0.0
        %578 = vmatprep.subr.mxu0 0.0
        %579 = vmatpush1.xpose.msra.mxu0 0.0
        %580 = vmatprep.subr.mxu0 0.0
        %581 = vmatpush1.xpose.msra.mxu0 0.0
        %582 = vmatprep.subr.mxu0 0.0
        %583 = vmatpush1.xpose.msra.mxu0 0.0
        %584 = vmatprep.subr.mxu0 0.0
        %585 = vmatpush1.xpose.msra.mxu0 0.0
        %586 = vmatprep.mubr.f32.mxu0 0.0
        %587 = vmatmul.mubr.f32.gmra.mrb[0].mxu0 %v518
        %v588 = vpop.f32.mrb[0].mxu0
        %v589 = vadd.f32 0.0, %v588
        %v590 = vpop.f32.mrb[0].mxu0
        %591 = vdwg.mxu0
        %v592 = vsel %vm429, %v589, -inf
        %593 = vmax.xlane.f32.xlu0 %v592
        %v594 = vpop.xlane.xlu0 %593
        %v595 = vsub.f32 %v589, %v594
        %v596 = vmul.f32 %v595, 1.442695
        %v597 = vpow.pop %v596
        %v598 = vsel %vm429, %v597, 0.0
        %599 = vadd.xlane.f32.xlu0 %v598
        %v600 = vpop.xlane.xlu0 %599
        %602 = vrot.lane.b32.xlu0 %v350, 64
        %v603 = vpop.permute.xlu0 %602
        %v606 = vsel %vm429, %v597, 0
        %608 = vmatprep.subr.mxu0 0.0
        %609 = vmatpush1.msra.mxu0 %v603
        %610 = vmatprep.subr.mxu0 0.0
        %611 = vmatpush1.msra.mxu0 0.0
        %612 = vmatprep.subr.mxu0 0.0
        %613 = vmatpush1.msra.mxu0 0.0
        %614 = vmatprep.subr.mxu0 0.0
        %615 = vmatpush1.msra.mxu0 0.0
        %616 = vmatprep.subr.mxu0 0.0
        %617 = vmatpush1.msra.mxu0 0.0
        %618 = vmatprep.subr.mxu0 0.0
        %619 = vmatpush1.msra.mxu0 0.0
        %620 = vmatprep.subr.mxu0 0.0
        %621 = vmatpush1.msra.mxu0 0.0
        %622 = vmatprep.subr.mxu0 0.0
        %623 = vmatpush1.msra.mxu0 0.0
        %624 = vmatprep.subr.mxu0 0.0
        %625 = vmatpush1.msra.mxu0 0.0
        %626 = vmatprep.subr.mxu0 0.0
        %627 = vmatpush1.msra.mxu0 0.0
        %628 = vmatprep.subr.mxu0 0.0
        %629 = vmatpush1.msra.mxu0 0.0
        %630 = vmatprep.subr.mxu0 0.0
        %631 = vmatpush1.msra.mxu0 0.0
        %632 = vmatprep.subr.mxu0 0.0
        %633 = vmatpush1.msra.mxu0 0.0
        %634 = vmatprep.subr.mxu0 0.0
        %635 = vmatpush1.msra.mxu0 0.0
        %636 = vmatprep.subr.mxu0 0.0
        %637 = vmatpush1.msra.mxu0 0.0
        %638 = vmatprep.subr.mxu0 0.0
        %639 = vmatpush1.msra.mxu0 0.0
        %640 = vmatprep.subr.mxu0 0.0
        %641 = vmatpush1.msra.mxu0 0.0
        %642 = vmatprep.subr.mxu0 0.0
        %643 = vmatpush1.msra.mxu0 0.0
        %644 = vmatprep.subr.mxu0 0.0
        %645 = vmatpush1.msra.mxu0 0.0
        %646 = vmatprep.subr.mxu0 0.0
        %647 = vmatpush1.msra.mxu0 0.0
        %648 = vmatprep.subr.mxu0 0.0
        %649 = vmatpush1.msra.mxu0 0.0
        %650 = vmatprep.subr.mxu0 0.0
        %651 = vmatpush1.msra.mxu0 0.0
        %652 = vmatprep.subr.mxu0 0.0
        %653 = vmatpush1.msra.mxu0 0.0
        %654 = vmatprep.subr.mxu0 0.0
        %655 = vmatpush1.msra.mxu0 0.0
        %656 = vmatprep.subr.mxu0 0.0
        %657 = vmatpush1.msra.mxu0 0.0
        %658 = vmatprep.subr.mxu0 0.0
        %659 = vmatpush1.msra.mxu0 0.0
        %660 = vmatprep.subr.mxu0 0.0
        %661 = vmatpush1.msra.mxu0 0.0
        %662 = vmatprep.subr.mxu0 0.0
        %663 = vmatpush1.msra.mxu0 0.0
        %664 = vmatprep.subr.mxu0 0.0
        %665 = vmatpush1.msra.mxu0 0.0
        %666 = vmatprep.subr.mxu0 0.0
        %667 = vmatpush1.msra.mxu0 0.0
        %668 = vmatprep.subr.mxu0 0.0
        %669 = vmatpush1.msra.mxu0 0.0
        %670 = vmatprep.subr.mxu0 0.0
        %671 = vmatpush1.msra.mxu0 0.0
        %672 = vmatprep.mubr.f32.mxu0 0.0
        %673 = vmatmul.mubr.f32.gmra.mrb[0].mxu0 %v606
        %v674 = vpop.f32.mrb[0].mxu0
        %v675 = vadd.f32 0.0, %v674
        %v676 = vpop.f32.mrb[0].mxu0
        %677 = vdwg.mxu0
        %v678 = vrcp.pop %v600
        %v679 = vmul.f32 %v675, %v678
        %681 = vrot.lane.b32.xlu0 %v679, 64
        %v682 = vpop.permute.xlu0 %681
        %v684 = vsel %vm208, %v513, %v682
        %685 = vst [vmem:[%s161] sm:$0xff] %v684
        %s686 = sand.u32 %s93, 1
        %s687 = scalar_lea.sflag [#allocation3], %s686
        %s688 = sand.u32 %s93, 1
        %s689 = smul.addr %s688, 8
        %s690 = scalar_lea.vmem [#allocation2], %s689
        // Predicated region
        $region33: #{encoder_forward.1} parent=31 // pred_check
          %p691 = pneg %p103
        $region34: #{encoder_forward.1} parent=31 // pred_check_branch
          %693 = sbr.rel (%p691) target = $region36
        $region35: #{encoder_forward.1} parent=31 // pred_region
          %s695 = ssub.s32 128, 128
          %696 = vsyncadd %s687, %s695
          %s697 = smul.addr %s17, 128
          %s698 = scalar_lea.hbm %s3, %s697
          %s700 = sshll.u32 %s690, 4
          %s701 = int_to_ptr.vmem [resolvable:$true] %s700
          %703 = dma.vmem_to_hbm [thread:$0]  %s701, 128, %s698, %s687
        $region36: #{encoder_forward.1} parent=31 // pred_fallthru
          _
      $region32: #{encoder_forward.1} parent=5 // pred_fallthru
        _
      %p704 = scmp.le.s32.totalorder 2, %s12
      // Predicated region
      $region37: #{encoder_forward.1} parent=5 // pred_check
        %p705 = pneg %p704
      $region38: #{encoder_forward.1} parent=5 // pred_check_branch
        %707 = sbr.rel (%p705) target = $region40
      $region39: #{encoder_forward.1} parent=5 // pred_region
        %s708 = ssub.s32 %s12, 2
        // Predicated region
        $region41: #{encoder_forward.1} parent=39 // pred_check
          %p709 = pneg %p109
        $region42: #{encoder_forward.1} parent=39 // pred_check_branch
          %711 = sbr.rel (%p709) target = $region44
        $region43: #{encoder_forward.1} parent=39 // pred_region
          %s712 = sand.u32 %s94, 1
          %s713 = scalar_lea.sflag [#allocation3], %s712
          %s714 = sand.u32 %s94, 1
          %s715 = smul.addr %s714, 8
          %s716 = scalar_lea.vmem [#allocation2], %s715
          %717 = dma.done %s713, 128
        $region44: #{encoder_forward.1} parent=39 // pred_fallthru
          _
      $region40: #{encoder_forward.1} parent=5 // pred_fallthru
        _
    $region6: #{encoder_forward.1} parent=1 // loop_footer
      %s16 = sadd.s32 1, %s12
    $region7: #{encoder_forward.1} parent=1 // loop_footer_branch
      %11 = sbr.rel target = $region3
    $region8: #{encoder_forward.1} parent=1 // loop_exit
      _
    %718 = vsyncpa [#allocation3], 1
    %s719 = scalar_lea.sflag [#allocation3], 1
    %720 = vsyncpa %s719, 1

</llo_original>
